<compile_context>
chip_gen: v7x
topology: tpu7x:2x2x1
jax: 0.10.0
libtpu: 0.0.40
codegen_flags: <defaults>
</compile_context>

<pallas_src>
import jax
import jax.numpy as jnp
from jax.experimental import pallas as pl
from jax.experimental.pallas import tpu as pltpu


def mlp_kernel(x_ref, w0_ref, b0_ref, w1_ref, b1_ref, w2_ref, b2_ref, o_ref):
    # Layer 0: (hidden, in) @ (in, tile_n) -> (hidden, tile_n); f32 accumulation.
    h = jnp.dot(w0_ref[...], x_ref[...], preferred_element_type=jnp.float32)
    h = jnp.maximum(h + b0_ref[...], 0.0)          # bias + ReLU in f32 (VPU)
    # Layer 1: (hidden, hidden) @ (hidden, tile_n)
    h = jnp.dot(w1_ref[...], h.astype(jnp.bfloat16),
                preferred_element_type=jnp.float32)
    h = jnp.maximum(h + b1_ref[...], 0.0)
    # Layer 2: (out, hidden) @ (hidden, tile_n)   (no activation, matches torch)
    h = jnp.dot(w2_ref[...], h.astype(jnp.bfloat16),
                preferred_element_type=jnp.float32)
    o_ref[...] = (h + b2_ref[...]).astype(o_ref.dtype)


def mlp_pallas(x, params, *, tile_n=512):
    """x: (N, in_chnl) float32.
    params (torch layout): w*: (out_features, in_features), b*: (out_features,)."""
    N, in_chnl = x.shape
    hidden = params["w0"].shape[0]
    out_chnl = params["w2"].shape[0]

    # Batch tile: multiple of 128 (lane-dense), capped by the (rounded) batch.
    n_round = pl.cdiv(N, 128) * 128
    tile_n = max(128, min(int(tile_n), n_round))
    tile_n = (tile_n // 128) * 128
    n_pad = pl.cdiv(N, tile_n) * tile_n

    # Layout plumbing on the host side: batch -> lanes, bf16 transfer dtypes.
    x_t = x.T.astype(jnp.bfloat16)                       # (in_chnl, N)
    if n_pad != N:
        x_t = jnp.pad(x_t, ((0, 0), (0, n_pad - N)))

    w0 = params["w0"].astype(jnp.bfloat16)               # (hidden, in)
    w1 = params["w1"].astype(jnp.bfloat16)               # (hidden, hidden)
    w2 = params["w2"].astype(jnp.bfloat16)               # (out, hidden)
    b0 = params["b0"].reshape(hidden, 1).astype(jnp.float32)
    b1 = params["b1"].reshape(hidden, 1).astype(jnp.float32)
    b2 = params["b2"].reshape(out_chnl, 1).astype(jnp.float32)

    grid = (n_pad // tile_n,)

    def resident(shape):
        # weights/biases: whole array, same block for every grid step (stays in VMEM)
        return pl.BlockSpec(shape, lambda i: (0, 0))

    flops = 2 * n_pad * (in_chnl * hidden + hidden * hidden + hidden * out_chnl)
    bytes_accessed = (
        in_chnl * n_pad * 2                                   # x (bf16)
        + (w0.size + w1.size + w2.size) * 2                   # weights (bf16)
        + (b0.size + b1.size + b2.size) * 4                   # biases (f32)
        + out_chnl * n_pad * 4                                # output (f32)
    )

    out_t = pl.pallas_call(
        mlp_kernel,
        out_shape=jax.ShapeDtypeStruct((out_chnl, n_pad), jnp.float32),
        grid=grid,
        in_specs=[
            pl.BlockSpec((in_chnl, tile_n), lambda i: (0, i)),   # x tile
            resident((hidden, in_chnl)),                         # w0
            resident((hidden, 1)),                               # b0
            resident((hidden, hidden)),                          # w1
            resident((hidden, 1)),                               # b1
            resident((out_chnl, hidden)),                        # w2
            resident((out_chnl, 1)),                             # b2
        ],
        out_specs=pl.BlockSpec((out_chnl, tile_n), lambda i: (0, i)),
        compiler_params=pltpu.CompilerParams(
            dimension_semantics=("parallel",)),
        cost_estimate=pl.CostEstimate(
            flops=flops, transcendentals=0, bytes_accessed=bytes_accessed),
    )(x_t, w0, b0, w1, b1, w2, b2)

    # Back to (N, out_chnl) row-major.
    return out_t[:, :N].T


def init_params(key, in_chnl=8, hidden_chnl=32, out_chnl=8):
    """Deterministic init mimicking torch.nn.Linear default (uniform +/- 1/sqrt(fan_in)).
    Weights stored in torch layout (out_features, in_features)."""
    ks = jax.random.split(key, 6)

    def lin(kw, kb, fan_in, fan_out):
        bound = 1.0 / jnp.sqrt(fan_in)
        w = jax.random.uniform(kw, (fan_out, fan_in), jnp.float32, -bound, bound)
        b = jax.random.uniform(kb, (fan_out,), jnp.float32, -bound, bound)
        return w, b

    w0, b0 = lin(ks[0], ks[1], in_chnl, hidden_chnl)
    w1, b1 = lin(ks[2], ks[3], hidden_chnl, hidden_chnl)
    w2, b2 = lin(ks[4], ks[5], hidden_chnl, out_chnl)
    return {"w0": w0, "b0": b0, "w1": w1, "b1": b1, "w2": w2, "b2": b2}


def mlp_ref(x, p):
    """Numerics-matched reference: bf16 matmul operands, f32 accumulation,
    f32 bias add / ReLU — identical recipe to the kernel."""
    def lin(h, w, b):
        return jnp.dot(h.astype(jnp.bfloat16), w.T.astype(jnp.bfloat16),
                       preferred_element_type=jnp.float32) + b
    h = jnp.maximum(lin(x, p["w0"], p["b0"]), 0.0)
    h = jnp.maximum(lin(h, p["w1"], p["b1"]), 0.0)
    return lin(h, p["w2"], p["b2"])


if __name__ == "__main__":
    key = jax.random.PRNGKey(0)
    k_x, k_p = jax.random.split(key)

    # Small but non-degenerate: 2 grid steps of 512 rows (keeps both v7x TCs busy).
    N, in_chnl, hidden_chnl, out_chnl = 1024, 8, 32, 8
    x = jax.random.normal(k_x, (N, in_chnl), jnp.float32)
    params = init_params(k_p, in_chnl, hidden_chnl, out_chnl)

    out = mlp_pallas(x, params, tile_n=512)
    out = jax.block_until_ready(out)

    ref = mlp_ref(x, params)
    assert out.shape == (N, out_chnl)
    assert jnp.allclose(out, ref, atol=2e-3, rtol=2e-3), "mismatch vs reference"

    print("KERNEL_OK")
</pallas_src>

<mosaic_0001>
module attributes {stable_mosaic.version = 11 : i64} {
  func.func @mlp_kernel(%arg0: i32, %arg1: memref<8x512xbf16, #tpu.memory_space<vmem>>, %arg2: memref<32x8xbf16, #tpu.memory_space<vmem>>, %arg3: memref<32x1xf32, #tpu.memory_space<vmem>>, %arg4: memref<32x32xbf16, #tpu.memory_space<vmem>>, %arg5: memref<32x1xf32, #tpu.memory_space<vmem>>, %arg6: memref<8x32xbf16, #tpu.memory_space<vmem>>, %arg7: memref<8x1xf32, #tpu.memory_space<vmem>>, %arg8: memref<8x512xf32, #tpu.memory_space<vmem>>) attributes {dimension_semantics = [#tpu.dimension_semantics<parallel>], iteration_bounds = array<i64: 2>, scalar_prefetch = 0 : i64, scratch_operands = 0 : i64, tpu.core_type = #tpu.core_type<tc>, window_params = [{transform_indices = @transform_0, window_bounds = array<i64: 8, 512>}, {pipeline_mode = #tpu.pipeline_mode<synchronous>, transform_indices = @transform_1, window_bounds = array<i64: 32, 8>}, {pipeline_mode = #tpu.pipeline_mode<synchronous>, transform_indices = @transform_2, window_bounds = array<i64: 32, 1>}, {pipeline_mode = #tpu.pipeline_mode<synchronous>, transform_indices = @transform_3, window_bounds = array<i64: 32, 32>}, {pipeline_mode = #tpu.pipeline_mode<synchronous>, transform_indices = @transform_4, window_bounds = array<i64: 32, 1>}, {pipeline_mode = #tpu.pipeline_mode<synchronous>, transform_indices = @transform_5, window_bounds = array<i64: 8, 32>}, {pipeline_mode = #tpu.pipeline_mode<synchronous>, transform_indices = @transform_6, window_bounds = array<i64: 8, 1>}, {transform_indices = @transform_7, window_bounds = array<i64: 8, 512>}]} {
    %c0 = arith.constant 0 : index
    %c0_0 = arith.constant 0 : index
    %0 = vector.load %arg2[%c0, %c0_0] : memref<32x8xbf16, #tpu.memory_space<vmem>>, vector<32x8xbf16>
    %c0_1 = arith.constant 0 : index
    %c0_2 = arith.constant 0 : index
    %1 = vector.load %arg1[%c0_1, %c0_2] : memref<8x512xbf16, #tpu.memory_space<vmem>>, vector<8x512xbf16>
    %cst = arith.constant dense<0.000000e+00> : vector<32x512xf32>
    %2 = tpu.matmul %0, %1, %cst {dimension_numbers = #tpu.dot_dimension_numbers<[1], [0], [0], [1], [0, 0, 1, 1], [], []>} : vector<32x8xbf16>, vector<8x512xbf16>, vector<32x512xf32> -> vector<32x512xf32>
    %c0_3 = arith.constant 0 : index
    %c0_4 = arith.constant 0 : index
    %3 = vector.load %arg3[%c0_3, %c0_4] : memref<32x1xf32, #tpu.memory_space<vmem>>, vector<32x1xf32>
    %4 = vector.broadcast %3 : vector<32x1xf32> to vector<32x512xf32>
    %5 = arith.addf %2, %4 : vector<32x512xf32>
    %cst_5 = arith.constant 0.000000e+00 : f32
    %6 = vector.broadcast %cst_5 : f32 to vector<32x512xf32>
    %7 = arith.maximumf %5, %6 : vector<32x512xf32>
    %c0_6 = arith.constant 0 : index
    %c0_7 = arith.constant 0 : index
    %8 = vector.load %arg4[%c0_6, %c0_7] : memref<32x32xbf16, #tpu.memory_space<vmem>>, vector<32x32xbf16>
    %9 = arith.truncf %7 : vector<32x512xf32> to vector<32x512xbf16>
    %cst_8 = arith.constant dense<0.000000e+00> : vector<32x512xf32>
    %10 = tpu.matmul %8, %9, %cst_8 {dimension_numbers = #tpu.dot_dimension_numbers<[1], [0], [0], [1], [0, 0, 1, 1], [], []>} : vector<32x32xbf16>, vector<32x512xbf16>, vector<32x512xf32> -> vector<32x512xf32>
    %c0_9 = arith.constant 0 : index
    %c0_10 = arith.constant 0 : index
    %11 = vector.load %arg5[%c0_9, %c0_10] : memref<32x1xf32, #tpu.memory_space<vmem>>, vector<32x1xf32>
    %12 = vector.broadcast %11 : vector<32x1xf32> to vector<32x512xf32>
    %13 = arith.addf %10, %12 : vector<32x512xf32>
    %cst_11 = arith.constant 0.000000e+00 : f32
    %14 = vector.broadcast %cst_11 : f32 to vector<32x512xf32>
    %15 = arith.maximumf %13, %14 : vector<32x512xf32>
    %c0_12 = arith.constant 0 : index
    %c0_13 = arith.constant 0 : index
    %16 = vector.load %arg6[%c0_12, %c0_13] : memref<8x32xbf16, #tpu.memory_space<vmem>>, vector<8x32xbf16>
    %17 = arith.truncf %15 : vector<32x512xf32> to vector<32x512xbf16>
    %cst_14 = arith.constant dense<0.000000e+00> : vector<8x512xf32>
    %18 = tpu.matmul %16, %17, %cst_14 {dimension_numbers = #tpu.dot_dimension_numbers<[1], [0], [0], [1], [0, 0, 1, 1], [], []>} : vector<8x32xbf16>, vector<32x512xbf16>, vector<8x512xf32> -> vector<8x512xf32>
    %c0_15 = arith.constant 0 : index
    %c0_16 = arith.constant 0 : index
    %19 = vector.load %arg7[%c0_15, %c0_16] : memref<8x1xf32, #tpu.memory_space<vmem>>, vector<8x1xf32>
    %20 = vector.broadcast %19 : vector<8x1xf32> to vector<8x512xf32>
    %21 = arith.addf %18, %20 : vector<8x512xf32>
    %c0_17 = arith.constant 0 : index
    %c0_18 = arith.constant 0 : index
    %22 = vector.load %arg8[%c0_17, %c0_18] : memref<8x512xf32, #tpu.memory_space<vmem>>, vector<8x512xf32>
    tpu.vector_store %arg8[%c0_17, %c0_18], %21 {strides = array<i32>} : memref<8x512xf32, #tpu.memory_space<vmem>>, vector<8x512xf32>,
    return
  }
  func.func @transform_0(%arg0: i32) -> (i32, i32) {
    %c0_i32 = arith.constant 0 : i32
    %c0_i32_0 = arith.constant 0 : i32
    return %c0_i32, %arg0 : i32, i32
  }
  func.func @transform_1(%arg0: i32) -> (i32, i32) {
    %c0_i32 = arith.constant 0 : i32
    %c0_i32_0 = arith.constant 0 : i32
    %c0_i32_1 = arith.constant 0 : i32
    return %c0_i32, %c0_i32_0 : i32, i32
  }
  func.func @transform_2(%arg0: i32) -> (i32, i32) {
    %c0_i32 = arith.constant 0 : i32
    %c0_i32_0 = arith.constant 0 : i32
    %c0_i32_1 = arith.constant 0 : i32
    return %c0_i32, %c0_i32_0 : i32, i32
  }
  func.func @transform_3(%arg0: i32) -> (i32, i32) {
    %c0_i32 = arith.constant 0 : i32
    %c0_i32_0 = arith.constant 0 : i32
    %c0_i32_1 = arith.constant 0 : i32
    return %c0_i32, %c0_i32_0 : i32, i32
  }
  func.func @transform_4(%arg0: i32) -> (i32, i32) {
    %c0_i32 = arith.constant 0 : i32
    %c0_i32_0 = arith.constant 0 : i32
    %c0_i32_1 = arith.constant 0 : i32
    return %c0_i32, %c0_i32_0 : i32, i32
  }
  func.func @transform_5(%arg0: i32) -> (i32, i32) {
    %c0_i32 = arith.constant 0 : i32
    %c0_i32_0 = arith.constant 0 : i32
    %c0_i32_1 = arith.constant 0 : i32
    return %c0_i32, %c0_i32_0 : i32, i32
  }
  func.func @transform_6(%arg0: i32) -> (i32, i32) {
    %c0_i32 = arith.constant 0 : i32
    %c0_i32_0 = arith.constant 0 : i32
    %c0_i32_1 = arith.constant 0 : i32
    return %c0_i32, %c0_i32_0 : i32, i32
  }
  func.func @transform_7(%arg0: i32) -> (i32, i32) {
    %c0_i32 = arith.constant 0 : i32
    %c0_i32_0 = arith.constant 0 : i32
    return %c0_i32, %arg0 : i32, i32
  }
}

</mosaic_0001>

<llo_original>
// kernel: tpu_custom_call.1
$region0: #{tpu_custom_call.1}
  #allocation0 [shape = 'u32[]', space=smem, size = 0x4, offset = 0x4, fixed_abs, tag = 'smem constant byte address 0x4 - core index']
  #allocation1 [shape = 'u32[144,128]{1,0:T(1,128)}', space=vmem, size = 0x12000, scoped, tag = 'internal scratch']
  %s0 = inlined_call_operand.vmem [shape: bf16[8,1024], index: 0, kind: input, shape index: {}]
  %s1 = inlined_call_operand.vmem [shape: bf16[32,8], index: 1, kind: input, shape index: {}]
  %s2 = inlined_call_operand.vmem [shape: f32[32,1], index: 2, kind: input, shape index: {}]
  %s3 = inlined_call_operand.vmem [shape: bf16[32,32], index: 3, kind: input, shape index: {}]
  %s4 = inlined_call_operand.vmem [shape: f32[32,1], index: 4, kind: input, shape index: {}]
  %s5 = inlined_call_operand.vmem [shape: bf16[8,32], index: 5, kind: input, shape index: {}]
  %s6 = inlined_call_operand.vmem [shape: f32[8,1], index: 6, kind: input, shape index: {}]
  %s7 = inlined_call_operand.hbm [shape: f32[8,1024], index: 7, kind: output, shape index: {}]
  %s8 = sld [smem:[#allocation0]]
  $region61: #{tpu_custom_call.1} parent=0
    _
  %s10 = ssub.s32 1, %s8
  %s11 = scalar_select 0, %s10, %s8
  $region1: #{tpu_custom_call.1} parent=0
    #allocation2 [shape = 'u8[32768]{0}', space=vmem, size = 0x8000, scoped, tag = 'output window, operand 0']
    #allocation3 [shape = 's32[2]{0}', space=sflag, size = 0x8, scoped, tag = 'scoped memory for tpu_custom_call.1']
    %12 = vsyncpa [#allocation3], 0
    %s13 = scalar_lea.sflag [#allocation3], 1
    %14 = vsyncpa %s13, 0
    loop: start=0, step=1, limit=4
    $region2: #{tpu_custom_call.1} parent=1 // loop_pre_header
      _
    $region3: #{tpu_custom_call.1} parent=1 // loop_header
      %s16 = sphi 0, %s20
      %p17 = scmp.ge.s32.totalorder %s16, 4
      %s26 = sphi 0, %s28
      %s29 = sphi 0, %s26
      %s30 = sphi 0, %s29
      %s46 = sphi 0, %s30
      %s50 = sphi 0, %s50
      %s52 = sphi 0, %s50
      %s53 = sphi 0, %s52
      %s67 = sphi 0, %s53
      %s71 = sphi 0, %s71
      %s73 = sphi 0, %s71
      %s74 = sphi 0, %s73
      %s88 = sphi 0, %s74
      %s92 = sphi 0, %s92
      %s94 = sphi 0, %s92
      %s95 = sphi 0, %s94
      %s109 = sphi 0, %s95
      %s113 = sphi 0, %s113
      %s115 = sphi 0, %s113
      %s116 = sphi 0, %s115
      %s130 = sphi 0, %s116
      %s134 = sphi 0, %s134
      %s136 = sphi 0, %s134
      %s137 = sphi 0, %s136
      %s151 = sphi 0, %s137
      %s155 = sphi 0, %s155
      %s157 = sphi 0, %s155
      %s158 = sphi 0, %s157
      %s172 = sphi 0, %s158
      %s178 = sphi 0, %s180
      %s181 = sphi 0, %s178
      %s182 = sphi 0, %s181
      %s198 = sphi 0, %s182
    $region4: #{tpu_custom_call.1} parent=1 // loop_header_branch
      %19 = sbr.rel (%p17) target = $region8
    $region5: #{tpu_custom_call.1} parent=1 // loop_body
      %s21 = ssub.s32 %s16, 1
      %s22 = ssub.s32 %s16, 2
      %s23 = sadd.s32 %s16, 1
      %s24 = ssub.s32 %s16, %s23
      %p25 = scmp.eq.s32.totalorder %s24, 0
      %s27 = sadd.s32 %s26, 1
      %s28 = scalar_select %p25, %s26, %s27
      %p31 = pneg %p25
      %p32 = scmp.eq.s32.totalorder %s16, 1
      %p33 = por %p31, %p32
      %p34 = scmp.ne.s32.totalorder %s26, %s29
      %p35 = scmp.eq.s32.totalorder %s16, 0
      %p36 = por %p34, %p35
      %p37 = scmp.ne.s32.totalorder %s26, %s29
      %p38 = scmp.eq.s32.totalorder %s21, 1
      %p39 = por %p37, %p38
      %p40 = scmp.ne.s32.totalorder %s29, %s30
      %p41 = scmp.eq.s32.totalorder %s21, 0
      %p42 = por %p40, %p41
      %p43 = scmp.ne.s32.totalorder %s29, %s30
      %p44 = scmp.eq.s32.totalorder %s22, 1
      %p45 = por %p43, %p44
      %p47 = scmp.ne.s32.totalorder %s30, %s46
      %p48 = scmp.eq.s32.totalorder %s22, 0
      %p49 = por %p47, %p48
      %s51 = sadd.s32 %s50, 1
      %p54 = scmp.eq.s32.totalorder %s16, 1
      %p55 = scmp.ne.s32.totalorder %s50, %s52
      %p56 = scmp.eq.s32.totalorder %s16, 0
      %p57 = por %p55, %p56
      %p58 = scmp.ne.s32.totalorder %s50, %s52
      %p59 = scmp.eq.s32.totalorder %s21, 1
      %p60 = por %p58, %p59
      %p61 = scmp.ne.s32.totalorder %s52, %s53
      %p62 = scmp.eq.s32.totalorder %s21, 0
      %p63 = por %p61, %p62
      %p64 = scmp.ne.s32.totalorder %s52, %s53
      %p65 = scmp.eq.s32.totalorder %s22, 1
      %p66 = por %p64, %p65
      %p68 = scmp.ne.s32.totalorder %s53, %s67
      %p69 = scmp.eq.s32.totalorder %s22, 0
      %p70 = por %p68, %p69
      %s72 = sadd.s32 %s71, 1
      %p75 = scmp.eq.s32.totalorder %s16, 1
      %p76 = scmp.ne.s32.totalorder %s71, %s73
      %p77 = scmp.eq.s32.totalorder %s16, 0
      %p78 = por %p76, %p77
      %p79 = scmp.ne.s32.totalorder %s71, %s73
      %p80 = scmp.eq.s32.totalorder %s21, 1
      %p81 = por %p79, %p80
      %p82 = scmp.ne.s32.totalorder %s73, %s74
      %p83 = scmp.eq.s32.totalorder %s21, 0
      %p84 = por %p82, %p83
      %p85 = scmp.ne.s32.totalorder %s73, %s74
      %p86 = scmp.eq.s32.totalorder %s22, 1
      %p87 = por %p85, %p86
      %p89 = scmp.ne.s32.totalorder %s74, %s88
      %p90 = scmp.eq.s32.totalorder %s22, 0
      %p91 = por %p89, %p90
      %s93 = sadd.s32 %s92, 1
      %p96 = scmp.eq.s32.totalorder %s16, 1
      %p97 = scmp.ne.s32.totalorder %s92, %s94
      %p98 = scmp.eq.s32.totalorder %s16, 0
      %p99 = por %p97, %p98
      %p100 = scmp.ne.s32.totalorder %s92, %s94
      %p101 = scmp.eq.s32.totalorder %s21, 1
      %p102 = por %p100, %p101
      %p103 = scmp.ne.s32.totalorder %s94, %s95
      %p104 = scmp.eq.s32.totalorder %s21, 0
      %p105 = por %p103, %p104
      %p106 = scmp.ne.s32.totalorder %s94, %s95
      %p107 = scmp.eq.s32.totalorder %s22, 1
      %p108 = por %p106, %p107
      %p110 = scmp.ne.s32.totalorder %s95, %s109
      %p111 = scmp.eq.s32.totalorder %s22, 0
      %p112 = por %p110, %p111
      %s114 = sadd.s32 %s113, 1
      %p117 = scmp.eq.s32.totalorder %s16, 1
      %p118 = scmp.ne.s32.totalorder %s113, %s115
      %p119 = scmp.eq.s32.totalorder %s16, 0
      %p120 = por %p118, %p119
      %p121 = scmp.ne.s32.totalorder %s113, %s115
      %p122 = scmp.eq.s32.totalorder %s21, 1
      %p123 = por %p121, %p122
      %p124 = scmp.ne.s32.totalorder %s115, %s116
      %p125 = scmp.eq.s32.totalorder %s21, 0
      %p126 = por %p124, %p125
      %p127 = scmp.ne.s32.totalorder %s115, %s116
      %p128 = scmp.eq.s32.totalorder %s22, 1
      %p129 = por %p127, %p128
      %p131 = scmp.ne.s32.totalorder %s116, %s130
      %p132 = scmp.eq.s32.totalorder %s22, 0
      %p133 = por %p131, %p132
      %s135 = sadd.s32 %s134, 1
      %p138 = scmp.eq.s32.totalorder %s16, 1
      %p139 = scmp.ne.s32.totalorder %s134, %s136
      %p140 = scmp.eq.s32.totalorder %s16, 0
      %p141 = por %p139, %p140
      %p142 = scmp.ne.s32.totalorder %s134, %s136
      %p143 = scmp.eq.s32.totalorder %s21, 1
      %p144 = por %p142, %p143
      %p145 = scmp.ne.s32.totalorder %s136, %s137
      %p146 = scmp.eq.s32.totalorder %s21, 0
      %p147 = por %p145, %p146
      %p148 = scmp.ne.s32.totalorder %s136, %s137
      %p149 = scmp.eq.s32.totalorder %s22, 1
      %p150 = por %p148, %p149
      %p152 = scmp.ne.s32.totalorder %s137, %s151
      %p153 = scmp.eq.s32.totalorder %s22, 0
      %p154 = por %p152, %p153
      %s156 = sadd.s32 %s155, 1
      %p159 = scmp.eq.s32.totalorder %s16, 1
      %p160 = scmp.ne.s32.totalorder %s155, %s157
      %p161 = scmp.eq.s32.totalorder %s16, 0
      %p162 = por %p160, %p161
      %p163 = scmp.ne.s32.totalorder %s155, %s157
      %p164 = scmp.eq.s32.totalorder %s21, 1
      %p165 = por %p163, %p164
      %p166 = scmp.ne.s32.totalorder %s157, %s158
      %p167 = scmp.eq.s32.totalorder %s21, 0
      %p168 = por %p166, %p167
      %p169 = scmp.ne.s32.totalorder %s157, %s158
      %p170 = scmp.eq.s32.totalorder %s22, 1
      %p171 = por %p169, %p170
      %p173 = scmp.ne.s32.totalorder %s158, %s172
      %p174 = scmp.eq.s32.totalorder %s22, 0
      %p175 = por %p173, %p174
      %s176 = ssub.s32 %s16, %s23
      %p177 = scmp.eq.s32.totalorder %s176, 0
      %s179 = sadd.s32 %s178, 1
      %s180 = scalar_select %p177, %s178, %s179
      %p183 = pneg %p177
      %p184 = scmp.eq.s32.totalorder %s16, 1
      %p185 = por %p183, %p184
      %p186 = scmp.ne.s32.totalorder %s178, %s181
      %p187 = scmp.eq.s32.totalorder %s16, 0
      %p188 = por %p186, %p187
      %p189 = scmp.ne.s32.totalorder %s178, %s181
      %p190 = scmp.eq.s32.totalorder %s21, 1
      %p191 = por %p189, %p190
      %p192 = scmp.ne.s32.totalorder %s181, %s182
      %p193 = scmp.eq.s32.totalorder %s21, 0
      %p194 = por %p192, %p193
      %p195 = scmp.ne.s32.totalorder %s181, %s182
      %p196 = scmp.eq.s32.totalorder %s22, 1
      %p197 = por %p195, %p196
      %p199 = scmp.ne.s32.totalorder %s182, %s198
      %p200 = scmp.eq.s32.totalorder %s22, 0
      %p201 = por %p199, %p200
      %p202 = scmp.le.s32.totalorder 1, %s16
      %p203 = scmp.lt.s32.totalorder %s16, 3
      %p204 = pnand %p202, %p203
      %p205 = pneg %p204
      // Predicated region
      $region9: #{tpu_custom_call.1} parent=5 // pred_check
        _
      $region10: #{tpu_custom_call.1} parent=5 // pred_check_branch
        %207 = sbr.rel (%p204) target = $region12
      $region11: #{tpu_custom_call.1} parent=5 // pred_region
        %s208 = ssub.s32 %s16, 1
        // Predicated region
        $region13: #{tpu_custom_call.1} parent=11 // pred_check
          %p209 = pneg %p63
        $region14: #{tpu_custom_call.1} parent=11 // pred_check_branch
          %211 = sbr.rel (%p209) target = $region16
        $region15: #{tpu_custom_call.1} parent=11 // pred_region
          _
        $region16: #{tpu_custom_call.1} parent=11 // pred_fallthru
          _
        // Predicated region
        $region17: #{tpu_custom_call.1} parent=11 // pred_check
          %p212 = pneg %p84
        $region18: #{tpu_custom_call.1} parent=11 // pred_check_branch
          %214 = sbr.rel (%p212) target = $region20
        $region19: #{tpu_custom_call.1} parent=11 // pred_region
          _
        $region20: #{tpu_custom_call.1} parent=11 // pred_fallthru
          _
        // Predicated region
        $region21: #{tpu_custom_call.1} parent=11 // pred_check
          %p215 = pneg %p105
        $region22: #{tpu_custom_call.1} parent=11 // pred_check_branch
          %217 = sbr.rel (%p215) target = $region24
        $region23: #{tpu_custom_call.1} parent=11 // pred_region
          _
        $region24: #{tpu_custom_call.1} parent=11 // pred_fallthru
          _
        // Predicated region
        $region25: #{tpu_custom_call.1} parent=11 // pred_check
          %p218 = pneg %p126
        $region26: #{tpu_custom_call.1} parent=11 // pred_check_branch
          %220 = sbr.rel (%p218) target = $region28
        $region27: #{tpu_custom_call.1} parent=11 // pred_region
          _
        $region28: #{tpu_custom_call.1} parent=11 // pred_fallthru
          _
        // Predicated region
        $region29: #{tpu_custom_call.1} parent=11 // pred_check
          %p221 = pneg %p147
        $region30: #{tpu_custom_call.1} parent=11 // pred_check_branch
          %223 = sbr.rel (%p221) target = $region32
        $region31: #{tpu_custom_call.1} parent=11 // pred_region
          _
        $region32: #{tpu_custom_call.1} parent=11 // pred_fallthru
          _
        // Predicated region
        $region33: #{tpu_custom_call.1} parent=11 // pred_check
          %p224 = pneg %p168
        $region34: #{tpu_custom_call.1} parent=11 // pred_check_branch
          %226 = sbr.rel (%p224) target = $region36
        $region35: #{tpu_custom_call.1} parent=11 // pred_region
          _
        $region36: #{tpu_custom_call.1} parent=11 // pred_fallthru
          _
      $region12: #{tpu_custom_call.1} parent=5 // pred_fallthru
        _
      %p227 = scmp.lt.s32.totalorder %s16, 2
      // Predicated region
      $region37: #{tpu_custom_call.1} parent=5 // pred_check
        %p228 = pneg %p227
      $region38: #{tpu_custom_call.1} parent=5 // pred_check_branch
        %230 = sbr.rel (%p228) target = $region40
      $region39: #{tpu_custom_call.1} parent=5 // pred_region
        // Predicated region
        $region41: #{tpu_custom_call.1} parent=39 // pred_check
          %p231 = pneg %p36
        $region42: #{tpu_custom_call.1} parent=39 // pred_check_branch
          %233 = sbr.rel (%p231) target = $region44
        $region43: #{tpu_custom_call.1} parent=39 // pred_region
          %s234 = smul.u32 4, %s16
          %p235 = scmp.lt.s32.totalorder %s234, 7
          %s236 = scalar_select %p235, %s234, 7
          %s237 = smul.addr %s236, 4
          %s238 = scalar_lea.vmem %s0, %s237
          %s239 = smul.u32 4, %s16
        $region44: #{tpu_custom_call.1} parent=39 // pred_fallthru
          _
      $region40: #{tpu_custom_call.1} parent=5 // pred_fallthru
        _
      %p240 = scmp.le.s32.totalorder 1, %s16
      %p241 = scmp.lt.s32.totalorder %s16, 3
      %p242 = pnand %p240, %p241
      %p243 = pneg %p242
      // Predicated region
      $region45: #{tpu_custom_call.1} parent=5 // pred_check
        _
      $region46: #{tpu_custom_call.1} parent=5 // pred_check_branch
        %245 = sbr.rel (%p242) target = $region48
      $region47: #{tpu_custom_call.1} parent=5 // pred_region
        %s246 = ssub.s32 %s16, 1
        %s247 = smul.u32 4, %s21
        %p248 = scmp.lt.s32.totalorder %s247, 7
        %s249 = scalar_select %p248, %s247, 7
        %s250 = smul.addr %s249, 4
        %s251 = scalar_lea.vmem %s0, %s250
        %p252 = pneg %p42
        %p253 = pneg %p39
        %p254 = pneg %p63
        %p255 = pneg %p60
        %p256 = pneg %p84
        %p257 = pneg %p81
        %p258 = pneg %p105
        %p259 = pneg %p102
        %p260 = pneg %p126
        %p261 = pneg %p123
        %p262 = pneg %p147
        %p263 = pneg %p144
        %p264 = pneg %p168
        %p265 = pneg %p165
        %p266 = pneg %p194
        %p267 = pneg %p191
        %s268 = sand.u32 %s181, 1
        %s269 = scalar_lea.sflag [#allocation3], %s268
        %s270 = sand.u32 %s181, 1
        %s271 = smul.addr %s270, 32
        %s272 = scalar_lea.vmem [#allocation2], %s271
        %s273 = smul.u32 4, %s21
        %p274 = scmp.lt.s32.totalorder %s273, 7
        %s275 = scalar_select %p274, %s273, 7
        %s276 = smul.addr %s275, 4
        %s277 = scalar_lea.vmem %s0, %s276
        %s278 = smul.u32 4, %s21
        %s279 = smul.u32 4, %s21
        %v281 = vld [vmem:[%s1] sm:$0xf]
        %v282 = vld [vmem:[%s1 + $0x4] sm:$0xf]
        %v283 = vld [vmem:[%s1 + $0x8] sm:$0xf]
        %v284 = vld [vmem:[%s1 + $0xc] sm:$0xf]
        %v285 = vld [vmem:[%s277] sm:$0xff]
        %v286 = vld [vmem:[%s277 + $0x8] sm:$0xff]
        %v287 = vld [vmem:[%s2] sm:$0xff]
        %v288 = vld [vmem:[%s2 + $0x8] sm:$0xff]
        %v289 = vld [vmem:[%s2 + $0x10] sm:$0xff]
        %v290 = vld [vmem:[%s2 + $0x18] sm:$0xff]
        %292 = vset.pattern.permute.xlu0 0
        %293 = vperm.xlu0 %292, %v287
        %v294 = vpop.permute.xlu0 %293
        %297 = vset.pattern.permute.xlu0 0
        %298 = vperm.xlu0 %297, %v288
        %v299 = vpop.permute.xlu0 %298
        %302 = vset.pattern.permute.xlu0 0
        %303 = vperm.xlu0 %302, %v289
        %v304 = vpop.permute.xlu0 %303
        %307 = vset.pattern.permute.xlu0 0
        %308 = vperm.xlu0 %307, %v290
        %v309 = vpop.permute.xlu0 %308
        %v315 = vunpack.c.l.b16 %v281
        %v316 = vunpack.c.l.b16 %v282
        %v317 = vunpack.c.l.b16 %v283
        %v318 = vunpack.c.l.b16 %v284
        %v319 = vpack.c.b16 %v316, %v315
        %v320 = vpack.c.b16 %v318, %v317
        %v323 = vunpack.c.l.b16 %v285
        %v324 = vunpack.c.h.b16 %v285
        %v325 = vunpack.c.l.b16 %v286
        %v326 = vunpack.c.h.b16 %v286
        %v327 = vpack.c.b16 %v323, %v323
        %v328 = vpack.c.b16 %v324, %v324
        %v329 = vpack.c.b16 %v325, %v325
        %v330 = vpack.c.b16 %v326, %v326
        %vm331 = vcmask 64512
        %v333 = vsel %vm331, %v319, 0
        %v336 = vsel %vm331, %v320, 0
        %vm338 = vcmask 1043456
        %v340 = vsel %vm338, %v327, 0
        %v343 = vsel %vm338, %v328, 0
        %v346 = vsel %vm338, %v329, 0
        %v349 = vsel %vm338, %v330, 0
        %351 = vmatprep.subr.bf16.mxu0 %v343
        %352 = vmatpush1.bf16.msra.mxu0 %v340
        %353 = vmatprep.subr.bf16.mxu0 0
        %354 = vmatpush1.bf16.msra.mxu0 0
        %355 = vmatprep.subr.bf16.mxu0 0
        %356 = vmatpush1.bf16.msra.mxu0 0
        %357 = vmatprep.subr.bf16.mxu0 0
        %358 = vmatpush1.bf16.msra.mxu0 0
        %359 = vmatprep.subr.bf16.mxu0 0
        %360 = vmatpush1.bf16.msra.mxu0 0
        %361 = vmatprep.subr.bf16.mxu0 0
        %362 = vmatpush1.bf16.msra.mxu0 0
        %363 = vmatprep.subr.bf16.mxu0 0
        %364 = vmatpush1.bf16.msra.mxu0 0
        %365 = vmatprep.subr.bf16.mxu0 0
        %366 = vmatpush1.bf16.msra.mxu0 0
        %367 = vmatprep.subr.bf16.mxu0 0
        %368 = vmatpush1.bf16.msra.mxu0 0
        %369 = vmatprep.subr.bf16.mxu0 0
        %370 = vmatpush1.bf16.msra.mxu0 0
        %371 = vmatprep.subr.bf16.mxu0 0
        %372 = vmatpush1.bf16.msra.mxu0 0
        %373 = vmatprep.subr.bf16.mxu0 0
        %374 = vmatpush1.bf16.msra.mxu0 0
        %375 = vmatprep.subr.bf16.mxu0 0
        %376 = vmatpush1.bf16.msra.mxu0 0
        %377 = vmatprep.subr.bf16.mxu0 0
        %378 = vmatpush1.bf16.msra.mxu0 0
        %379 = vmatprep.subr.bf16.mxu0 0
        %380 = vmatpush1.bf16.msra.mxu0 0
        %381 = vmatprep.subr.bf16.mxu0 0
        %382 = vmatpush1.bf16.msra.mxu0 0
        %383 = vmatprep.mubr.bf16.mxu0 0
        %384 = vmatmul.mubr.bf16.gmra.mrb[0].mxu0 %v333
        %v385 = vpop.f32.mrb[0].mxu0
        %v386 = vadd.f32 %v294, %v385
        %v387 = vpop.f32.mrb[0].mxu0
        %v388 = vadd.f32 %v294, %v387
        %v389 = vpop.f32.mrb[0].mxu0
        %v390 = vadd.f32 %v299, %v389
        %v391 = vpop.f32.mrb[0].mxu0
        %v392 = vadd.f32 %v299, %v391
        %393 = vmatprep.mubr.bf16.mxu0 0
        %394 = vmatmul.mubr.bf16.gmra.mrb[0].mxu0 %v336
        %v395 = vpop.f32.mrb[0].mxu0
        %v396 = vadd.f32 %v304, %v395
        %v397 = vpop.f32.mrb[0].mxu0
        %v398 = vadd.f32 %v304, %v397
        %v399 = vpop.f32.mrb[0].mxu0
        %v400 = vadd.f32 %v309, %v399
        %v401 = vpop.f32.mrb[0].mxu0
        %v402 = vadd.f32 %v309, %v401
        %403 = vdwg.mxu0
        %404 = vmatprep.subr.bf16.mxu0 %v349
        %405 = vmatpush1.bf16.msra.mxu0 %v346
        %406 = vmatprep.subr.bf16.mxu0 0
        %407 = vmatpush1.bf16.msra.mxu0 0
        %408 = vmatprep.subr.bf16.mxu0 0
        %409 = vmatpush1.bf16.msra.mxu0 0
        %410 = vmatprep.subr.bf16.mxu0 0
        %411 = vmatpush1.bf16.msra.mxu0 0
        %412 = vmatprep.subr.bf16.mxu0 0
        %413 = vmatpush1.bf16.msra.mxu0 0
        %414 = vmatprep.subr.bf16.mxu0 0
        %415 = vmatpush1.bf16.msra.mxu0 0
        %416 = vmatprep.subr.bf16.mxu0 0
        %417 = vmatpush1.bf16.msra.mxu0 0
        %418 = vmatprep.subr.bf16.mxu0 0
        %419 = vmatpush1.bf16.msra.mxu0 0
        %420 = vmatprep.subr.bf16.mxu0 0
        %421 = vmatpush1.bf16.msra.mxu0 0
        %422 = vmatprep.subr.bf16.mxu0 0
        %423 = vmatpush1.bf16.msra.mxu0 0
        %424 = vmatprep.subr.bf16.mxu0 0
        %425 = vmatpush1.bf16.msra.mxu0 0
        %426 = vmatprep.subr.bf16.mxu0 0
        %427 = vmatpush1.bf16.msra.mxu0 0
        %428 = vmatprep.subr.bf16.mxu0 0
        %429 = vmatpush1.bf16.msra.mxu0 0
        %430 = vmatprep.subr.bf16.mxu0 0
        %431 = vmatpush1.bf16.msra.mxu0 0
        %432 = vmatprep.subr.bf16.mxu0 0
        %433 = vmatpush1.bf16.msra.mxu0 0
        %434 = vmatprep.subr.bf16.mxu0 0
        %435 = vmatpush1.bf16.msra.mxu0 0
        %436 = vmatprep.mubr.bf16.mxu0 0
        %437 = vmatmul.mubr.bf16.gmra.mrb[0].mxu0 %v333
        %v438 = vpop.f32.mrb[0].mxu0
        %v439 = vadd.f32 %v294, %v438
        %v440 = vpop.f32.mrb[0].mxu0
        %v441 = vadd.f32 %v294, %v440
        %v442 = vpop.f32.mrb[0].mxu0
        %v443 = vadd.f32 %v299, %v442
        %v444 = vpop.f32.mrb[0].mxu0
        %v445 = vadd.f32 %v299, %v444
        %446 = vmatprep.mubr.bf16.mxu0 0
        %447 = vmatmul.mubr.bf16.gmra.mrb[0].mxu0 %v336
        %v448 = vpop.f32.mrb[0].mxu0
        %v449 = vadd.f32 %v304, %v448
        %v450 = vpop.f32.mrb[0].mxu0
        %v451 = vadd.f32 %v304, %v450
        %v452 = vpop.f32.mrb[0].mxu0
        %v453 = vadd.f32 %v309, %v452
        %v454 = vpop.f32.mrb[0].mxu0
        %v455 = vadd.f32 %v309, %v454
        %456 = vdwg.mxu0
        %v457 = vmax.f32 %v386, 0.0
        %v458 = vmax.f32 %v388, 0.0
        %v459 = vmax.f32 %v439, 0.0
        %v460 = vmax.f32 %v441, 0.0
        %v461 = vmax.f32 %v390, 0.0
        %v462 = vmax.f32 %v392, 0.0
        %v463 = vmax.f32 %v443, 0.0
        %v464 = vmax.f32 %v445, 0.0
        %v465 = vmax.f32 %v396, 0.0
        %v466 = vmax.f32 %v398, 0.0
        %v467 = vmax.f32 %v449, 0.0
        %v468 = vmax.f32 %v451, 0.0
        %v469 = vmax.f32 %v400, 0.0
        %v470 = vmax.f32 %v402, 0.0
        %v471 = vmax.f32 %v453, 0.0
        %v472 = vmax.f32 %v455, 0.0
        %v473 = vld [vmem:[%s3] sm:$0xf]
        %v474 = vld [vmem:[%s3 + $0x4] sm:$0xf]
        %v475 = vld [vmem:[%s3 + $0x8] sm:$0xf]
        %v476 = vld [vmem:[%s3 + $0xc] sm:$0xf]
        %v477 = vpack.c.bf16 %v461, %v457
        %v478 = vpack.c.bf16 %v462, %v458
        %v479 = vpack.c.bf16 %v463, %v459
        %v480 = vpack.c.bf16 %v464, %v460
        %v481 = vpack.c.bf16 %v469, %v465
        %v482 = vpack.c.bf16 %v470, %v466
        %v483 = vpack.c.bf16 %v471, %v467
        %v484 = vpack.c.bf16 %v472, %v468
        %v485 = vld [vmem:[%s4] sm:$0xff]
        %v486 = vld [vmem:[%s4 + $0x8] sm:$0xff]
        %v487 = vld [vmem:[%s4 + $0x10] sm:$0xff]
        %v488 = vld [vmem:[%s4 + $0x18] sm:$0xff]
        %490 = vset.pattern.permute.xlu0 0
        %491 = vperm.xlu0 %490, %v485
        %v492 = vpop.permute.xlu0 %491
        %495 = vset.pattern.permute.xlu0 0
        %496 = vperm.xlu0 %495, %v486
        %v497 = vpop.permute.xlu0 %496
        %500 = vset.pattern.permute.xlu0 0
        %501 = vperm.xlu0 %500, %v487
        %v502 = vpop.permute.xlu0 %501
        %505 = vset.pattern.permute.xlu0 0
        %506 = vperm.xlu0 %505, %v488
        %v507 = vpop.permute.xlu0 %506
        %v513 = vunpack.c.l.b16 %v473
        %v514 = vunpack.c.l.b16 %v474
        %v515 = vunpack.c.l.b16 %v475
        %v516 = vunpack.c.l.b16 %v476
        %v517 = vpack.c.b16 %v514, %v513
        %v518 = vpack.c.b16 %v516, %v515
        %vm519 = vcmask 261120
        %v521 = vsel %vm519, %v517, 0
        %v524 = vsel %vm519, %v518, 0
        %526 = vmatprep.subr.bf16.mxu0 %v478
        %527 = vmatpush1.bf16.msra.mxu0 %v477
        %528 = vmatprep.subr.bf16.mxu0 %v482
        %529 = vmatpush1.bf16.msra.mxu0 %v481
        %530 = vmatprep.subr.bf16.mxu0 0
        %531 = vmatpush1.bf16.msra.mxu0 0
        %532 = vmatprep.subr.bf16.mxu0 0
        %533 = vmatpush1.bf16.msra.mxu0 0
        %534 = vmatprep.subr.bf16.mxu0 0
        %535 = vmatpush1.bf16.msra.mxu0 0
        %536 = vmatprep.subr.bf16.mxu0 0
        %537 = vmatpush1.bf16.msra.mxu0 0
        %538 = vmatprep.subr.bf16.mxu0 0
        %539 = vmatpush1.bf16.msra.mxu0 0
        %540 = vmatprep.subr.bf16.mxu0 0
        %541 = vmatpush1.bf16.msra.mxu0 0
        %542 = vmatprep.subr.bf16.mxu0 0
        %543 = vmatpush1.bf16.msra.mxu0 0
        %544 = vmatprep.subr.bf16.mxu0 0
        %545 = vmatpush1.bf16.msra.mxu0 0
        %546 = vmatprep.subr.bf16.mxu0 0
        %547 = vmatpush1.bf16.msra.mxu0 0
        %548 = vmatprep.subr.bf16.mxu0 0
        %549 = vmatpush1.bf16.msra.mxu0 0
        %550 = vmatprep.subr.bf16.mxu0 0
        %551 = vmatpush1.bf16.msra.mxu0 0
        %552 = vmatprep.subr.bf16.mxu0 0
        %553 = vmatpush1.bf16.msra.mxu0 0
        %554 = vmatprep.subr.bf16.mxu0 0
        %555 = vmatpush1.bf16.msra.mxu0 0
        %556 = vmatprep.subr.bf16.mxu0 0
        %557 = vmatpush1.bf16.msra.mxu0 0
        %558 = vmatprep.mubr.bf16.mxu0 0
        %559 = vmatmul.mubr.bf16.gmra.mrb[0].mxu0 %v521
        %v560 = vpop.f32.mrb[0].mxu0
        %v561 = vadd.f32 %v492, %v560
        %v562 = vpop.f32.mrb[0].mxu0
        %v563 = vadd.f32 %v492, %v562
        %v564 = vpop.f32.mrb[0].mxu0
        %v565 = vadd.f32 %v497, %v564
        %v566 = vpop.f32.mrb[0].mxu0
        %v567 = vadd.f32 %v497, %v566
        %568 = vmatprep.mubr.bf16.mxu0 0
        %569 = vmatmul.mubr.bf16.gmra.mrb[0].mxu0 %v524
        %v570 = vpop.f32.mrb[0].mxu0
        %v571 = vadd.f32 %v502, %v570
        %v572 = vpop.f32.mrb[0].mxu0
        %v573 = vadd.f32 %v502, %v572
        %v574 = vpop.f32.mrb[0].mxu0
        %v575 = vadd.f32 %v507, %v574
        %v576 = vpop.f32.mrb[0].mxu0
        %v577 = vadd.f32 %v507, %v576
        %578 = vdwg.mxu0
        %579 = vmatprep.subr.bf16.mxu0 %v480
        %580 = vmatpush1.bf16.msra.mxu0 %v479
        %581 = vmatprep.subr.bf16.mxu0 %v484
        %582 = vmatpush1.bf16.msra.mxu0 %v483
        %583 = vmatprep.subr.bf16.mxu0 0
        %584 = vmatpush1.bf16.msra.mxu0 0
        %585 = vmatprep.subr.bf16.mxu0 0
        %586 = vmatpush1.bf16.msra.mxu0 0
        %587 = vmatprep.subr.bf16.mxu0 0
        %588 = vmatpush1.bf16.msra.mxu0 0
        %589 = vmatprep.subr.bf16.mxu0 0
        %590 = vmatpush1.bf16.msra.mxu0 0
        %591 = vmatprep.subr.bf16.mxu0 0
        %592 = vmatpush1.bf16.msra.mxu0 0
        %593 = vmatprep.subr.bf16.mxu0 0
        %594 = vmatpush1.bf16.msra.mxu0 0
        %595 = vmatprep.subr.bf16.mxu0 0
        %596 = vmatpush1.bf16.msra.mxu0 0
        %597 = vmatprep.subr.bf16.mxu0 0
        %598 = vmatpush1.bf16.msra.mxu0 0
        %599 = vmatprep.subr.bf16.mxu0 0
        %600 = vmatpush1.bf16.msra.mxu0 0
        %601 = vmatprep.subr.bf16.mxu0 0
        %602 = vmatpush1.bf16.msra.mxu0 0
        %603 = vmatprep.subr.bf16.mxu0 0
        %604 = vmatpush1.bf16.msra.mxu0 0
        %605 = vmatprep.subr.bf16.mxu0 0
        %606 = vmatpush1.bf16.msra.mxu0 0
        %607 = vmatprep.subr.bf16.mxu0 0
        %608 = vmatpush1.bf16.msra.mxu0 0
        %609 = vmatprep.subr.bf16.mxu0 0
        %610 = vmatpush1.bf16.msra.mxu0 0
        %611 = vmatprep.mubr.bf16.mxu0 0
        %612 = vmatmul.mubr.bf16.gmra.mrb[0].mxu0 %v521
        %v613 = vpop.f32.mrb[0].mxu0
        %v614 = vadd.f32 %v492, %v613
        %v615 = vpop.f32.mrb[0].mxu0
        %v616 = vadd.f32 %v492, %v615
        %v617 = vpop.f32.mrb[0].mxu0
        %v618 = vadd.f32 %v497, %v617
        %v619 = vpop.f32.mrb[0].mxu0
        %v620 = vadd.f32 %v497, %v619
        %621 = vmatprep.mubr.bf16.mxu0 0
        %622 = vmatmul.mubr.bf16.gmra.mrb[0].mxu0 %v524
        %v623 = vpop.f32.mrb[0].mxu0
        %v624 = vadd.f32 %v502, %v623
        %v625 = vpop.f32.mrb[0].mxu0
        %v626 = vadd.f32 %v502, %v625
        %v627 = vpop.f32.mrb[0].mxu0
        %v628 = vadd.f32 %v507, %v627
        %v629 = vpop.f32.mrb[0].mxu0
        %v630 = vadd.f32 %v507, %v629
        %631 = vdwg.mxu0
        %v632 = vmax.f32 %v561, 0.0
        %v633 = vmax.f32 %v563, 0.0
        %v634 = vmax.f32 %v614, 0.0
        %v635 = vmax.f32 %v616, 0.0
        %v636 = vmax.f32 %v565, 0.0
        %v637 = vmax.f32 %v567, 0.0
        %v638 = vmax.f32 %v618, 0.0
        %v639 = vmax.f32 %v620, 0.0
        %v640 = vmax.f32 %v571, 0.0
        %v641 = vmax.f32 %v573, 0.0
        %v642 = vmax.f32 %v624, 0.0
        %v643 = vmax.f32 %v626, 0.0
        %v644 = vmax.f32 %v575, 0.0
        %v645 = vmax.f32 %v577, 0.0
        %v646 = vmax.f32 %v628, 0.0
        %v647 = vmax.f32 %v630, 0.0
        %v648 = vld [vmem:[%s5] sm:$0xf]
        %v649 = vpack.c.bf16 %v636, %v632
        %v650 = vpack.c.bf16 %v637, %v633
        %v651 = vpack.c.bf16 %v638, %v634
        %v652 = vpack.c.bf16 %v639, %v635
        %v653 = vpack.c.bf16 %v644, %v640
        %v654 = vpack.c.bf16 %v645, %v641
        %v655 = vpack.c.bf16 %v646, %v642
        %v656 = vpack.c.bf16 %v647, %v643
        %v657 = vld [vmem:[%s6] sm:$0xff]
        %659 = vset.pattern.permute.xlu0 0
        %660 = vperm.xlu0 %659, %v657
        %v661 = vpop.permute.xlu0 %660
        %v664 = vsel %vm519, %v648, 0
        %666 = vmatprep.subr.bf16.mxu0 %v650
        %667 = vmatpush1.bf16.msra.mxu0 %v649
        %668 = vmatprep.subr.bf16.mxu0 %v654
        %669 = vmatpush1.bf16.msra.mxu0 %v653
        %670 = vmatprep.subr.bf16.mxu0 0
        %671 = vmatpush1.bf16.msra.mxu0 0
        %672 = vmatprep.subr.bf16.mxu0 0
        %673 = vmatpush1.bf16.msra.mxu0 0
        %674 = vmatprep.subr.bf16.mxu0 0
        %675 = vmatpush1.bf16.msra.mxu0 0
        %676 = vmatprep.subr.bf16.mxu0 0
        %677 = vmatpush1.bf16.msra.mxu0 0
        %678 = vmatprep.subr.bf16.mxu0 0
        %679 = vmatpush1.bf16.msra.mxu0 0
        %680 = vmatprep.subr.bf16.mxu0 0
        %681 = vmatpush1.bf16.msra.mxu0 0
        %682 = vmatprep.subr.bf16.mxu0 0
        %683 = vmatpush1.bf16.msra.mxu0 0
        %684 = vmatprep.subr.bf16.mxu0 0
        %685 = vmatpush1.bf16.msra.mxu0 0
        %686 = vmatprep.subr.bf16.mxu0 0
        %687 = vmatpush1.bf16.msra.mxu0 0
        %688 = vmatprep.subr.bf16.mxu0 0
        %689 = vmatpush1.bf16.msra.mxu0 0
        %690 = vmatprep.subr.bf16.mxu0 0
        %691 = vmatpush1.bf16.msra.mxu0 0
        %692 = vmatprep.subr.bf16.mxu0 0
        %693 = vmatpush1.bf16.msra.mxu0 0
        %694 = vmatprep.subr.bf16.mxu0 0
        %695 = vmatpush1.bf16.msra.mxu0 0
        %696 = vmatprep.subr.bf16.mxu0 0
        %697 = vmatpush1.bf16.msra.mxu0 0
        %698 = vmatprep.mubr.bf16.mxu0 0
        %699 = vmatmul.mubr.bf16.gmra.mrb[0].mxu0 %v664
        %v700 = vpop.f32.mrb[0].mxu0
        %v701 = vadd.f32 %v661, %v700
        %v702 = vpop.f32.mrb[0].mxu0
        %v703 = vadd.f32 %v661, %v702
        %v704 = vpop.f32.mrb[0].mxu0
        %v705 = vpop.f32.mrb[0].mxu0
        %706 = vdwg.mxu0
        %707 = vmatprep.subr.bf16.mxu0 %v652
        %708 = vmatpush1.bf16.msra.mxu0 %v651
        %709 = vmatprep.subr.bf16.mxu0 %v656
        %710 = vmatpush1.bf16.msra.mxu0 %v655
        %711 = vmatprep.subr.bf16.mxu0 0
        %712 = vmatpush1.bf16.msra.mxu0 0
        %713 = vmatprep.subr.bf16.mxu0 0
        %714 = vmatpush1.bf16.msra.mxu0 0
        %715 = vmatprep.subr.bf16.mxu0 0
        %716 = vmatpush1.bf16.msra.mxu0 0
        %717 = vmatprep.subr.bf16.mxu0 0
        %718 = vmatpush1.bf16.msra.mxu0 0
        %719 = vmatprep.subr.bf16.mxu0 0
        %720 = vmatpush1.bf16.msra.mxu0 0
        %721 = vmatprep.subr.bf16.mxu0 0
        %722 = vmatpush1.bf16.msra.mxu0 0
        %723 = vmatprep.subr.bf16.mxu0 0
        %724 = vmatpush1.bf16.msra.mxu0 0
        %725 = vmatprep.subr.bf16.mxu0 0
        %726 = vmatpush1.bf16.msra.mxu0 0
        %727 = vmatprep.subr.bf16.mxu0 0
        %728 = vmatpush1.bf16.msra.mxu0 0
        %729 = vmatprep.subr.bf16.mxu0 0
        %730 = vmatpush1.bf16.msra.mxu0 0
        %731 = vmatprep.subr.bf16.mxu0 0
        %732 = vmatpush1.bf16.msra.mxu0 0
        %733 = vmatprep.subr.bf16.mxu0 0
        %734 = vmatpush1.bf16.msra.mxu0 0
        %735 = vmatprep.subr.bf16.mxu0 0
        %736 = vmatpush1.bf16.msra.mxu0 0
        %737 = vmatprep.subr.bf16.mxu0 0
        %738 = vmatpush1.bf16.msra.mxu0 0
        %739 = vmatprep.mubr.bf16.mxu0 0
        %740 = vmatmul.mubr.bf16.gmra.mrb[0].mxu0 %v664
        %v741 = vpop.f32.mrb[0].mxu0
        %v742 = vadd.f32 %v661, %v741
        %v743 = vpop.f32.mrb[0].mxu0
        %v744 = vadd.f32 %v661, %v743
        %v745 = vpop.f32.mrb[0].mxu0
        %v746 = vpop.f32.mrb[0].mxu0
        %747 = vdwg.mxu0
        %748 = vst [vmem:[%s272] sm:$0xff] %v701
        %749 = vst [vmem:[%s272 + $0x8] sm:$0xff] %v703
        %750 = vst [vmem:[%s272 + $0x10] sm:$0xff] %v742
        %751 = vst [vmem:[%s272 + $0x18] sm:$0xff] %v744
        %s752 = sand.u32 %s181, 1
        %s753 = scalar_lea.sflag [#allocation3], %s752
        %s754 = sand.u32 %s181, 1
        %s755 = smul.addr %s754, 32
        %s756 = scalar_lea.vmem [#allocation2], %s755
        // Predicated region
        $region49: #{tpu_custom_call.1} parent=47 // pred_check
          %p757 = pneg %p191
        $region50: #{tpu_custom_call.1} parent=47 // pred_check_branch
          %759 = sbr.rel (%p757) target = $region52
        $region51: #{tpu_custom_call.1} parent=47 // pred_region
          %s760 = smul.u32 4, %s21
          %s762 = ssub.s32 512, 512
          %763 = vsyncadd %s753, %s762
          %s764 = smul.addr %s760, 128
          %s765 = scalar_lea.hbm %s7, %s764
          %s767 = sshll.u32 %s756, 4
          %s768 = int_to_ptr.vmem [resolvable:$true] %s767
          %770 = dma.vmem_to_hbm [thread:$0]  %s768, 512, %s765, %s753
        $region52: #{tpu_custom_call.1} parent=47 // pred_fallthru
          _
      $region48: #{tpu_custom_call.1} parent=5 // pred_fallthru
        _
      %p771 = scmp.le.s32.totalorder 2, %s16
      // Predicated region
      $region53: #{tpu_custom_call.1} parent=5 // pred_check
        %p772 = pneg %p771
      $region54: #{tpu_custom_call.1} parent=5 // pred_check_branch
        %774 = sbr.rel (%p772) target = $region56
      $region55: #{tpu_custom_call.1} parent=5 // pred_region
        %s775 = ssub.s32 %s16, 2
        // Predicated region
        $region57: #{tpu_custom_call.1} parent=55 // pred_check
          %p776 = pneg %p197
        $region58: #{tpu_custom_call.1} parent=55 // pred_check_branch
          %778 = sbr.rel (%p776) target = $region60
        $region59: #{tpu_custom_call.1} parent=55 // pred_region
          %s779 = sand.u32 %s182, 1
          %s780 = scalar_lea.sflag [#allocation3], %s779
          %s781 = sand.u32 %s182, 1
          %s782 = smul.addr %s781, 32
          %s783 = scalar_lea.vmem [#allocation2], %s782
          %784 = dma.done %s780, 512
        $region60: #{tpu_custom_call.1} parent=55 // pred_fallthru
          _
      $region56: #{tpu_custom_call.1} parent=5 // pred_fallthru
        _
    $region6: #{tpu_custom_call.1} parent=1 // loop_footer
      %s20 = sadd.s32 1, %s16
    $region7: #{tpu_custom_call.1} parent=1 // loop_footer_branch
      %15 = sbr.rel target = $region3
    $region8: #{tpu_custom_call.1} parent=1 // loop_exit
      _
    %785 = vsyncpa [#allocation3], 1
    %s786 = scalar_lea.sflag [#allocation3], 1
    %787 = vsyncpa %s786, 1

</llo_original>
